<compile_context>
chip_gen: v7x
topology: tpu7x:2x2x1
jax: 0.10.0
libtpu: 0.0.40
codegen_flags: <defaults>
</compile_context>

<pallas_src>
import functools
import math

import jax
import jax.numpy as jnp
from jax import lax
from jax.experimental import pallas as pl
from jax.experimental.pallas import tpu as pltpu


def _default_vmem_limit():
    # Generation-aware scoped-VMEM limit: ~5/8 of physical VMEM, capped at 40 MiB so the
    # same config stays honest against v7x's 64 MiB (v5e/v6e have 128 MiB).
    try:
        cap = pltpu.get_tpu_info().vmem_capacity_bytes
    except Exception:
        cap = 64 * 1024 * 1024
    return min(int(cap * 5 // 8), 40 * 1024 * 1024)


_VMEM_LIMIT = _default_vmem_limit()
_TILE_BUDGET = int(_VMEM_LIMIT * 0.6)   # headroom for Mosaic internal scratch / spills


def _choose_tile(dim, cap, align=16):
    """Largest tile <= cap that divides dim, preferring multiples of `align` (16 for bf16
    sublane packing), falling back to multiples of 8, then the full dim."""
    if dim <= cap:
        return dim
    for a in (align, 8):
        t = (cap // a) * a
        while t >= a:
            if dim % t == 0:
                return t
            t -= a
    return dim


def _pick_tm(M, K, N):
    """Row tile for a weight-resident dense: fit (2x-buffered x/out tiles + f32 epilogue
    temp + 2x-buffered resident weight) into the tile budget."""
    w_bytes = 2 * (K * N * 2)                       # bf16 weight, assume double-buffered
    per_row = 2 * (K * 2) + 2 * (N * 2) + N * 4     # x dbl-buf + out dbl-buf + f32 epilogue
    avail = max(_TILE_BUDGET - w_bytes, per_row * 16)
    cap = max(16, min(1024, avail // per_row))
    return _choose_tile(M, cap, 16)


# -------------------- weight-resident dense (bias [+ GELU] fused) --------------------

def _dense_kernel(x_ref, w_ref, b_ref, o_ref, *, activation):
    y = jnp.dot(x_ref[...], w_ref[...], preferred_element_type=jnp.float32)
    y = y + b_ref[...].astype(jnp.float32)
    if activation == "gelu":           # exact erf GELU, as in HF RoBERTa
        y = 0.5 * y * (1.0 + lax.erf(y * (1.0 / math.sqrt(2.0))))
    o_ref[...] = y.astype(o_ref.dtype)


def dense(x, w, b, activation=None):
    """y = act(x @ w + b). x:[M,K] bf16, w:[K,N] bf16 (fully VMEM-resident), b:[N]."""
    M, K = x.shape
    N = w.shape[1]
    tm = _pick_tm(M, K, N)
    cost = pl.CostEstimate(
        flops=2 * M * N * K,
        transcendentals=(M * N if activation == "gelu" else 0),
        bytes_accessed=(M * K + K * N + N + M * N) * 2)
    return pl.pallas_call(
        functools.partial(_dense_kernel, activation=activation),
        out_shape=jax.ShapeDtypeStruct((M, N), jnp.bfloat16),
        grid=(M // tm,),
        in_specs=[
            pl.BlockSpec((tm, K), lambda i: (i, 0)),
            pl.BlockSpec((K, N), lambda i: (0, 0)),    # weight streamed once, stays resident
            pl.BlockSpec((1, N), lambda i: (0, 0)),
        ],
        out_specs=pl.BlockSpec((tm, N), lambda i: (i, 0)),
        compiler_params=pltpu.CompilerParams(
            dimension_semantics=("parallel",),
            vmem_limit_bytes=_VMEM_LIMIT),
        cost_estimate=cost,
    )(x, w, b.reshape(1, N))


# ---------- weight-resident dense + bias + residual + LayerNorm (fused epilogue) ----------

def _dense_add_ln_kernel(x_ref, w_ref, b_ref, r_ref, g_ref, bb_ref, o_ref, *, eps):
    y = jnp.dot(x_ref[...], w_ref[...], preferred_element_type=jnp.float32)
    y = y + b_ref[...].astype(jnp.float32) + r_ref[...].astype(jnp.float32)
    mu = jnp.mean(y, axis=-1, keepdims=True)
    yc = y - mu
    var = jnp.mean(yc * yc, axis=-1, keepdims=True)
    y = yc * lax.rsqrt(var + eps) * g_ref[...] + bb_ref[...]
    o_ref[...] = y.astype(o_ref.dtype)


def dense_add_layernorm(x, w, b, residual, gamma, beta, eps=1e-5):
    """LayerNorm(x @ w + b + residual); the full hidden width N stays untiled so the LN
    epilogue sees complete rows; weight is fully VMEM-resident (single K step)."""
    M, K = x.shape
    N = w.shape[1]
    tm = _pick_tm(M, K, N)
    cost = pl.CostEstimate(
        flops=2 * M * N * K + 8 * M * N,
        transcendentals=M,  # rsqrt per row
        bytes_accessed=(M * K + K * N + 2 * M * N) * 2 + 3 * N * 4)
    return pl.pallas_call(
        functools.partial(_dense_add_ln_kernel, eps=eps),
        out_shape=jax.ShapeDtypeStruct((M, N), jnp.bfloat16),
        grid=(M // tm,),
        in_specs=[
            pl.BlockSpec((tm, K), lambda i: (i, 0)),
            pl.BlockSpec((K, N), lambda i: (0, 0)),
            pl.BlockSpec((1, N), lambda i: (0, 0)),
            pl.BlockSpec((tm, N), lambda i: (i, 0)),
            pl.BlockSpec((1, N), lambda i: (0, 0)),
            pl.BlockSpec((1, N), lambda i: (0, 0)),
        ],
        out_specs=pl.BlockSpec((tm, N), lambda i: (i, 0)),
        compiler_params=pltpu.CompilerParams(
            dimension_semantics=("parallel",),
            vmem_limit_bytes=_VMEM_LIMIT),
        cost_estimate=cost,
    )(x, w, b.reshape(1, N), residual, gamma.reshape(1, N), beta.reshape(1, N))


# ------------------------------ standalone LayerNorm ------------------------------

def _ln_kernel(x_ref, g_ref, b_ref, o_ref, *, eps):
    x = x_ref[...].astype(jnp.float32)
    mu = jnp.mean(x, axis=-1, keepdims=True)
    xc = x - mu
    var = jnp.mean(xc * xc, axis=-1, keepdims=True)
    o_ref[...] = (xc * lax.rsqrt(var + eps) * g_ref[...] + b_ref[...]).astype(o_ref.dtype)


def layernorm(x, gamma, beta, eps=1e-5, *, tm_cap=512):
    """Row-tiled LayerNorm over the last dim. Accepts f32 input so the embedding LN
    statistics are computed from unrounded sums (matches the HF reference)."""
    M, H = x.shape
    tm = _choose_tile(M, tm_cap, 16)
    return pl.pallas_call(
        functools.partial(_ln_kernel, eps=eps),
        out_shape=jax.ShapeDtypeStruct((M, H), jnp.bfloat16),
        grid=(M // tm,),
        in_specs=[
            pl.BlockSpec((tm, H), lambda i: (i, 0)),
            pl.BlockSpec((1, H), lambda i: (0, 0)),
            pl.BlockSpec((1, H), lambda i: (0, 0)),
        ],
        out_specs=pl.BlockSpec((tm, H), lambda i: (i, 0)),
        compiler_params=pltpu.CompilerParams(
            dimension_semantics=("parallel",),
            vmem_limit_bytes=_VMEM_LIMIT),
    )(x, gamma.reshape(1, H), beta.reshape(1, H))


# ------------------------------ attention core ------------------------------

def _attn_kernel(q_ref, k_ref, v_ref, m_ref, o_ref, *, hpg, dh):
    # One (batch, head-group) step. The 1/sqrt(dh) scale is already folded into the Q
    # projection weights, and softmax normalization is deferred to the [S, dh] context.
    q = q_ref[0]                      # [S, gw] bf16, gw = hpg*dh (128 lanes for dh=64)
    k = k_ref[0]
    v = v_ref[0]
    bias = m_ref[0]                   # [1, S] f32 key-position mask bias
    ctxs = []
    for h in range(hpg):              # static, tiny loop (head pairs for roberta-base)
        lo, hi = h * dh, (h + 1) * dh
        # QK^T via dot_general contracting the last axes -> no materialized k.T
        s = lax.dot_general(q[:, lo:hi], k[:, lo:hi],
                            (((1,), (1,)), ((), ())),
                            preferred_element_type=jnp.float32)
        s = s + bias
        s = s - jnp.max(s, axis=-1, keepdims=True)
        p = jnp.exp(s)
        denom = jnp.sum(p, axis=-1, keepdims=True)           # [S, 1]
        ctx = jnp.dot(p.astype(v.dtype), v[:, lo:hi],
                      preferred_element_type=jnp.float32)     # [S, dh] f32
        ctxs.append(ctx * pl.reciprocal(denom, approx=True))  # normalize [S,dh], not [S,S]
    out = ctxs[0] if hpg == 1 else jnp.concatenate(ctxs, axis=-1)
    o_ref[0] = out.astype(o_ref.dtype)    # single lane-dense [S, gw] store
    # TODO(synk): for long sequences (S >> 512) add flash-style key tiling with online
    # softmax instead of materializing the full [S, S] scores per head.


def mha(qkv, mask_bias, nh):
    """qkv: packed [B, S, 3H] projections (scale pre-folded into Q); mask_bias: [B,1,S] f32.
    Grid = (B, head_group); head groups are sized so the per-step Q/K/V/output slabs are
    lane-aligned (128 wide for dh=64) and the SxS score working set stays small."""
    B, S, H3 = qkv.shape
    H = H3 // 3
    dh = H // nh
    hpg = max(1, min(nh, 128 // dh)) if dh < 128 else 1   # heads per group
    while nh % hpg != 0:
        hpg -= 1
    gw = hpg * dh                  # group width (lanes)
    ng = nh // hpg                 # head groups; H == ng * gw
    kern = functools.partial(_attn_kernel, hpg=hpg, dh=dh)
    return pl.pallas_call(
        kern,
        out_shape=jax.ShapeDtypeStruct((B, S, H), jnp.bfloat16),
        grid=(B, ng),
        in_specs=[
            pl.BlockSpec((1, S, gw), lambda b, g: (b, 0, g)),            # Q group slab
            pl.BlockSpec((1, S, gw), lambda b, g: (b, 0, ng + g)),       # K group slab
            pl.BlockSpec((1, S, gw), lambda b, g: (b, 0, 2 * ng + g)),   # V group slab
            pl.BlockSpec((1, 1, S), lambda b, g: (b, 0, 0)),             # mask bias
        ],
        out_specs=pl.BlockSpec((1, S, gw), lambda b, g: (b, 0, g)),
        compiler_params=pltpu.CompilerParams(
            dimension_semantics=("parallel", "parallel"),
            vmem_limit_bytes=_VMEM_LIMIT),
    )(qkv, qkv, qkv, mask_bias)


# --------------------------- fused pooler + classifier ---------------------------

def _pooler_head_kernel(x_ref, pw_ref, pb_ref, fw_ref, fb_ref, o_ref):
    cls = x_ref[0, 0:1, :]             # CLS row of this sequence (row 0 of the window)
    pooled = jnp.dot(cls, pw_ref[...], preferred_element_type=jnp.float32)
    pooled = jnp.tanh(pooled + pb_ref[...].astype(jnp.float32))
    # TODO(synk): nn.Dropout(p=0.3) is identity at inference; training-mode dropout
    # would use pltpu.prng_seed / pltpu.prng_random_bits.
    logits = jnp.dot(pooled.astype(fw_ref.dtype), fw_ref[...],
                     preferred_element_type=jnp.float32)
    o_ref[0] = logits + fb_ref[...].astype(jnp.float32)


def pooler_head(h_bsh, pool_w, pool_b, fc_w, fc_b):
    """CLS rows are read directly via the BlockSpec index map (first sublane-aligned
    window of each sequence) — no XLA gather of the hidden state."""
    B, S, H = h_bsh.shape
    C = fc_w.shape[1]
    rows = 8 if S >= 8 else S          # sublane-aligned CLS window
    out = pl.pallas_call(
        _pooler_head_kernel,
        out_shape=jax.ShapeDtypeStruct((B, 1, C), jnp.float32),
        grid=(B,),
        in_specs=[
            pl.BlockSpec((1, rows, H), lambda b: (b, 0, 0)),
            pl.BlockSpec((H, H), lambda b: (0, 0)),
            pl.BlockSpec((1, H), lambda b: (0, 0)),
            pl.BlockSpec((H, C), lambda b: (0, 0)),
            pl.BlockSpec((1, C), lambda b: (0, 0)),
        ],
        out_specs=pl.BlockSpec((1, 1, C), lambda b: (b, 0, 0)),
        compiler_params=pltpu.CompilerParams(
            dimension_semantics=("parallel",),
            vmem_limit_bytes=_VMEM_LIMIT),
    )(h_bsh, pool_w, pool_b.reshape(1, H), fc_w, fc_b.reshape(1, C))
    return out.reshape(B, C)


# ------------------------------ model wrapper -------------------------------

def init_params(key, cfg):
    H, F, L = cfg["hidden"], cfg["ffn"], cfg["layers"]
    V, P, C = cfg["vocab"], cfg["max_pos"], cfg["n_classes"]
    nh = cfg["heads"]
    dh = H // nh
    scale = 1.0 / math.sqrt(dh)
    keys = iter(jax.random.split(key, 16 + 16 * L))

    def w(shape, dtype=jnp.float32, s=0.02):
        return (jax.random.normal(next(keys), shape, jnp.float32) * s).astype(dtype)

    def zeros(n, dt=jnp.bfloat16):
        return jnp.zeros((n,), dt)

    def ones(n, dt=jnp.float32):
        return jnp.ones((n,), dt)

    params = dict(
        word_emb=w((V, H)),
        pos_emb=w((P, H)),
        type_emb=w((1, H)),
        emb_ln_g=ones(H), emb_ln_b=zeros(H, jnp.float32),
        layers=[],
        pool_w=w((H, H), jnp.bfloat16), pool_b=zeros(H),
        fc_w=w((H, C), jnp.bfloat16), fc_b=zeros(C),
    )
    for _ in range(L):
        wq, wk, wv = w((H, H)), w((H, H)), w((H, H))
        bq, bk, bv = (jnp.zeros((H,), jnp.float32),) * 3
        # fused QKV weight [H, 3H]; 1/sqrt(dh) folded into the Q columns (and Q bias),
        # so the attention kernel never scales the SxS score matrix.
        wqkv = jnp.concatenate([wq * scale, wk, wv], axis=1).astype(jnp.bfloat16)
        bqkv = jnp.concatenate([bq * scale, bk, bv]).astype(jnp.bfloat16)
        params["layers"].append(dict(
            wqkv=wqkv, bqkv=bqkv,
            wo=w((H, H), jnp.bfloat16), bo=zeros(H),
            ln1_g=ones(H), ln1_b=zeros(H, jnp.float32),
            w1=w((H, F), jnp.bfloat16), b1=zeros(F),
            w2=w((F, H), jnp.bfloat16), b2=zeros(H),
            ln2_g=ones(H), ln2_b=zeros(H, jnp.float32),
        ))
    return params


def news_classifier_forward(params, input_ids, attention_mask, cfg):
    B, S = input_ids.shape
    H, nh = cfg["hidden"], cfg["heads"]
    pad_idx = 1

    # --- RoBERTa embeddings (gathers are plain-JAX glue, summed in f32) ---
    mask_f = attention_mask.astype(jnp.float32)
    pos_ids = jnp.cumsum(attention_mask, axis=1) * attention_mask + pad_idx
    emb = (params["word_emb"][input_ids]
           + params["pos_emb"][pos_ids]
           + params["type_emb"][jnp.zeros_like(input_ids)])          # f32 [B, S, H]
    # LN stats from the f32 sums; activations bf16 afterwards.
    h = layernorm(emb.reshape(B * S, H), params["emb_ln_g"], params["emb_ln_b"])

    # additive key-position mask bias, [B, 1, S] f32 (applied to f32 scores)
    bias = ((1.0 - mask_f) * -1e9)[:, None, :]

    for layer in params["layers"]:
        # fused QKV projection: one weight-resident [M,H] x [H,3H] matmul
        qkv = dense(h, layer["wqkv"], layer["bqkv"]).reshape(B, S, 3 * H)
        ctx = mha(qkv, bias, nh).reshape(B * S, H)
        # output projection with bias + residual + LayerNorm fused in the epilogue
        h = dense_add_layernorm(ctx, layer["wo"], layer["bo"], h,
                                layer["ln1_g"], layer["ln1_b"])
        # feed-forward: GELU fused into the up-projection; down-projection fused
        # with bias + residual + LayerNorm
        ff = dense(h, layer["w1"], layer["b1"], activation="gelu")
        h = dense_add_layernorm(ff, layer["w2"], layer["b2"], h,
                                layer["ln2_g"], layer["ln2_b"])

    # pooler (tanh) + dropout(identity at inference) + classifier, one fused kernel
    logits = pooler_head(h.reshape(B, S, H), params["pool_w"], params["pool_b"],
                         params["fc_w"], params["fc_b"])
    return logits


if __name__ == "__main__":
    cfg = dict(hidden=32, heads=2, ffn=64, layers=2,
               vocab=50, max_pos=64, n_classes=4)
    B, S = 2, 8

    key = jax.random.PRNGKey(0)
    k_param, k_ids = jax.random.split(key)
    params = init_params(k_param, cfg)

    input_ids = jax.random.randint(k_ids, (B, S), 2, cfg["vocab"], dtype=jnp.int32)
    # second sequence has 3 padding tokens
    attention_mask = jnp.array([[1] * S, [1] * (S - 3) + [0] * 3], dtype=jnp.int32)
    input_ids = jnp.where(attention_mask == 1, input_ids, 1)  # pad token id = 1

    logits = news_classifier_forward(params, input_ids, attention_mask, cfg)
    logits = jax.block_until_ready(logits)
    assert logits.shape == (B, cfg["n_classes"])
    assert bool(jnp.all(jnp.isfinite(logits)))
    print("KERNEL_OK")
</pallas_src>

<mosaic_0001>
module attributes {stable_mosaic.version = 11 : i64} {
  func.func @_ln_kernel(%arg0: i32, %arg1: memref<16x32xf32, #tpu.memory_space<vmem>>, %arg2: memref<1x32xf32, #tpu.memory_space<vmem>>, %arg3: memref<1x32xf32, #tpu.memory_space<vmem>>, %arg4: memref<16x32xbf16, #tpu.memory_space<vmem>>) attributes {dimension_semantics = [#tpu.dimension_semantics<parallel>], iteration_bounds = array<i64: 1>, scalar_prefetch = 0 : i64, scratch_operands = 0 : i64, tpu.core_type = #tpu.core_type<tc>, window_params = [{transform_indices = @transform_0, window_bounds = array<i64: 16, 32>}, {pipeline_mode = #tpu.pipeline_mode<synchronous>, transform_indices = @transform_1, window_bounds = array<i64: 1, 32>}, {pipeline_mode = #tpu.pipeline_mode<synchronous>, transform_indices = @transform_2, window_bounds = array<i64: 1, 32>}, {transform_indices = @transform_3, window_bounds = array<i64: 16, 32>}]} {
    %c0 = arith.constant 0 : index
    %c0_0 = arith.constant 0 : index
    %0 = vector.load %arg1[%c0, %c0_0] : memref<16x32xf32, #tpu.memory_space<vmem>>, vector<16x32xf32>
    %cst = arith.constant dense<0.000000e+00> : vector<16xf32>
    %1 = vector.multi_reduction <add>, %0, %cst [1] : vector<16x32xf32> to vector<16xf32>
    %2 = vector.shape_cast %1 : vector<16xf32> to vector<16x1xf32>
    %cst_1 = arith.constant 3.200000e+01 : f32
    %3 = vector.broadcast %cst_1 : f32 to vector<16x1xf32>
    %4 = arith.divf %2, %3 : vector<16x1xf32>
    %5 = vector.broadcast %4 : vector<16x1xf32> to vector<16x32xf32>
    %6 = arith.subf %0, %5 : vector<16x32xf32>
    %7 = arith.mulf %6, %6 : vector<16x32xf32>
    %cst_2 = arith.constant dense<0.000000e+00> : vector<16xf32>
    %8 = vector.multi_reduction <add>, %7, %cst_2 [1] : vector<16x32xf32> to vector<16xf32>
    %9 = vector.shape_cast %8 : vector<16xf32> to vector<16x1xf32>
    %cst_3 = arith.constant 3.200000e+01 : f32
    %10 = vector.broadcast %cst_3 : f32 to vector<16x1xf32>
    %11 = arith.divf %9, %10 : vector<16x1xf32>
    %cst_4 = arith.constant 9.99999974E-6 : f32
    %12 = vector.broadcast %cst_4 : f32 to vector<16x1xf32>
    %13 = arith.addf %11, %12 : vector<16x1xf32>
    %14 = math.rsqrt %13 : vector<16x1xf32>
    %15 = vector.broadcast %14 : vector<16x1xf32> to vector<16x32xf32>
    %16 = arith.mulf %6, %15 : vector<16x32xf32>
    %c0_5 = arith.constant 0 : index
    %c0_6 = arith.constant 0 : index
    %17 = vector.load %arg2[%c0_5, %c0_6] : memref<1x32xf32, #tpu.memory_space<vmem>>, vector<1x32xf32>
    %18 = vector.broadcast %17 : vector<1x32xf32> to vector<16x32xf32>
    %19 = arith.mulf %16, %18 : vector<16x32xf32>
    %c0_7 = arith.constant 0 : index
    %c0_8 = arith.constant 0 : index
    %20 = vector.load %arg3[%c0_7, %c0_8] : memref<1x32xf32, #tpu.memory_space<vmem>>, vector<1x32xf32>
    %21 = vector.broadcast %20 : vector<1x32xf32> to vector<16x32xf32>
    %22 = arith.addf %19, %21 : vector<16x32xf32>
    %23 = arith.truncf %22 : vector<16x32xf32> to vector<16x32xbf16>
    %c0_9 = arith.constant 0 : index
    %c0_10 = arith.constant 0 : index
    %24 = vector.load %arg4[%c0_9, %c0_10] : memref<16x32xbf16, #tpu.memory_space<vmem>>, vector<16x32xbf16>
    tpu.vector_store %arg4[%c0_9, %c0_10], %23 {strides = array<i32>} : memref<16x32xbf16, #tpu.memory_space<vmem>>, vector<16x32xbf16>,
    return
  }
  func.func @transform_0(%arg0: i32) -> (i32, i32) {
    %c0_i32 = arith.constant 0 : i32
    %c0_i32_0 = arith.constant 0 : i32
    return %arg0, %c0_i32 : i32, i32
  }
  func.func @transform_1(%arg0: i32) -> (i32, i32) {
    %c0_i32 = arith.constant 0 : i32
    %c0_i32_0 = arith.constant 0 : i32
    %c0_i32_1 = arith.constant 0 : i32
    return %c0_i32, %c0_i32_0 : i32, i32
  }
  func.func @transform_2(%arg0: i32) -> (i32, i32) {
    %c0_i32 = arith.constant 0 : i32
    %c0_i32_0 = arith.constant 0 : i32
    %c0_i32_1 = arith.constant 0 : i32
    return %c0_i32, %c0_i32_0 : i32, i32
  }
  func.func @transform_3(%arg0: i32) -> (i32, i32) {
    %c0_i32 = arith.constant 0 : i32
    %c0_i32_0 = arith.constant 0 : i32
    return %arg0, %c0_i32 : i32, i32
  }
}

</mosaic_0001>

<llo_original>
// kernel: tpu_custom_call.1
$region0: #{tpu_custom_call.1}
  #allocation0 [shape = 'u32[]', space=smem, size = 0x4, offset = 0x4, fixed_abs, tag = 'smem constant byte address 0x4 - core index']
  #allocation1 [shape = 'u32[144,128]{1,0:T(1,128)}', space=vmem, size = 0x12000, scoped, tag = 'internal scratch']
  %s0 = inlined_call_operand.hbm [shape: f32[16,32], index: 0, kind: input, shape index: {}]
  %s1 = inlined_call_operand.vmem [shape: f32[1,32], index: 1, kind: input, shape index: {}]
  %s2 = inlined_call_operand.vmem [shape: f32[1,32], index: 2, kind: input, shape index: {}]
  %s3 = inlined_call_operand.hbm [shape: bf16[16,32], index: 3, kind: output, shape index: {}]
  %s4 = sld [smem:[#allocation0]]
  $region26: #{tpu_custom_call.1} parent=0
    _
  %s6 = ssub.s32 1, %s4
  %s7 = scalar_select 0, %s6, %s4
  $region1: #{tpu_custom_call.1} parent=0
    #allocation2 [shape = 'u8[8192]{0}', space=vmem, size = 0x2000, scoped, tag = 'input window, operand 0, single buffered']
    #allocation3 [shape = 's32[1]{0}', space=sflag, size = 0x4, scoped, tag = 'scoped memory for tpu_custom_call.1']
    #allocation4 [shape = 's32[1]{0}', space=sflag, size = 0x4, scoped, tag = 'scoped memory for tpu_custom_call.1']
    #allocation5 [shape = 'u8[4096]{0}', space=vmem, size = 0x1000, scoped, tag = 'output window, operand 0, single buffered']
    %8 = vsyncpa [#allocation3], 0
    %9 = vsyncpa [#allocation4], 0
    // Predicated region
    $region2: #{tpu_custom_call.1} parent=1 // pred_check
      _
    $region3: #{tpu_custom_call.1} parent=1 // pred_check_branch
      %11 = sbr.rel (0) target = $region5
    $region4: #{tpu_custom_call.1} parent=1 // pred_region
      %s13 = ssub.s32 256, 256
      %14 = vsyncadd [#allocation3], %s13
      %s15 = sshll.u32 [#allocation2], 4
      %s16 = int_to_ptr.vmem [resolvable:$true] %s15
      %21 = dma.hbm_to_vmem [thread:$0]  %s0, 256, %s16, [#allocation3], 128, 128, 8
    $region5: #{tpu_custom_call.1} parent=1 // pred_fallthru
      _
    // Predicated region
    $region6: #{tpu_custom_call.1} parent=1 // pred_check
      _
    $region7: #{tpu_custom_call.1} parent=1 // pred_check_branch
      %23 = sbr.rel (0) target = $region9
    $region8: #{tpu_custom_call.1} parent=1 // pred_region
      _
    $region9: #{tpu_custom_call.1} parent=1 // pred_fallthru
      _
    // Predicated region
    $region10: #{tpu_custom_call.1} parent=1 // pred_check
      _
    $region11: #{tpu_custom_call.1} parent=1 // pred_check_branch
      %25 = sbr.rel (0) target = $region13
    $region12: #{tpu_custom_call.1} parent=1 // pred_region
      _
    $region13: #{tpu_custom_call.1} parent=1 // pred_fallthru
      _
    // Predicated region
    $region14: #{tpu_custom_call.1} parent=1 // pred_check
      _
    $region15: #{tpu_custom_call.1} parent=1 // pred_check_branch
      %27 = sbr.rel (0) target = $region17
    $region16: #{tpu_custom_call.1} parent=1 // pred_region
      %28 = dma.done [#allocation3], 256
    $region17: #{tpu_custom_call.1} parent=1 // pred_fallthru
      _
    %v29 = vld [vmem:[#allocation2] sm:$0xff]
    %v30 = vld [vmem:[#allocation2 + $0x8] sm:$0xff]
    %vm31 = vcmask 261120
    %v32 = vsel %vm31, %v29, 0.0
    %33 = vadd.xlane.f32.xlu0 %v32
    %v34 = vpop.xlane.xlu0 %33
    %v35 = vsel %vm31, %v30, 0.0
    %36 = vadd.xlane.f32.xlu0 %v35
    %v37 = vpop.xlane.xlu0 %36
    %v38 = vrcp.pop 32.0
    %v39 = vmul.f32 %v34, %v38
    %v40 = vmul.f32 %v37, %v38
    %v41 = vsub.f32 %v29, %v39
    %v42 = vsub.f32 %v30, %v40
    %v43 = vmul.f32 %v41, %v41
    %v44 = vmul.f32 %v42, %v42
    %v45 = vsel %vm31, %v43, 0.0
    %46 = vadd.xlane.f32.xlu0 %v45
    %v47 = vpop.xlane.xlu0 %46
    %v48 = vsel %vm31, %v44, 0.0
    %49 = vadd.xlane.f32.xlu0 %v48
    %v50 = vpop.xlane.xlu0 %49
    %v51 = vmul.f32 %v47, %v38
    %v52 = vmul.f32 %v50, %v38
    %v53 = vadd.f32 %v51, 1e-05
    %v54 = vadd.f32 %v52, 1e-05
    %v55 = vrsqrt.pop %v53
    %v56 = vrsqrt.pop %v54
    %v57 = vmul.f32 %v41, %v55
    %v58 = vmul.f32 %v42, %v56
    %v59 = vld [vmem:[%s1] sm:$0x1]
    %v61 = vlaneseq
    %v62 = vshrl.u32 %v61, 7
    %v63 = vsub.s32 0, %v62
    %v64 = vrot.slane %v59, %v63
    %v66 = vmul.f32 %v57, %v64
    %v67 = vmul.f32 %v58, %v64
    %v68 = vld [vmem:[%s2] sm:$0x1]
    %v70 = vlaneseq
    %v71 = vshrl.u32 %v70, 7
    %v72 = vsub.s32 0, %v71
    %v73 = vrot.slane %v68, %v72
    %v75 = vadd.f32 %v66, %v73
    %v76 = vadd.f32 %v67, %v73
    %v77 = vpack.c.bf16 %v76, %v75
    %v79 = vunpack.c.l.b16 %v77
    %v80 = vunpack.c.h.b16 %v77
    %v81 = vpack.c.b16 %v79, %v79
    %v82 = vpack.c.b16 %v80, %v80
    %vm85 = vcmask 257024
    %86 = vst.msk [vmem:[#allocation5] sm:$0xf] %vm85, %v81
    %87 = vst.msk [vmem:[#allocation5 + $0x4] sm:$0xf] %vm85, %v82
    // Predicated region
    $region18: #{tpu_custom_call.1} parent=1 // pred_check
      _
    $region19: #{tpu_custom_call.1} parent=1 // pred_check_branch
      %89 = sbr.rel (0) target = $region21
    $region20: #{tpu_custom_call.1} parent=1 // pred_region
      %s91 = ssub.s32 128, 128
      %92 = vsyncadd [#allocation4], %s91
      %s93 = sshll.u32 [#allocation5], 4
      %s94 = int_to_ptr.vmem [resolvable:$true] %s93
      %99 = dma.vmem_to_hbm [thread:$0]  %s94, 128, %s3, [#allocation4], 64, 64, 4
    $region21: #{tpu_custom_call.1} parent=1 // pred_fallthru
      _
    // Predicated region
    $region22: #{tpu_custom_call.1} parent=1 // pred_check
      _
    $region23: #{tpu_custom_call.1} parent=1 // pred_check_branch
      %101 = sbr.rel (0) target = $region25
    $region24: #{tpu_custom_call.1} parent=1 // pred_region
      %102 = dma.done [#allocation4], 128
    $region25: #{tpu_custom_call.1} parent=1 // pred_fallthru
      _
    %103 = vsyncpa [#allocation3], 1
    %104 = vsyncpa [#allocation4], 1

</llo_original>
